<compile_context>
chip_gen: v7x
topology: tpu7x:2x2x1
jax: 0.10.0
libtpu: 0.0.40
codegen_flags: <defaults>
</compile_context>

<pallas_src>
import functools

import jax
import jax.numpy as jnp
from jax.experimental import pallas as pl
from jax.experimental.pallas import tpu as pltpu


def _round_up(x, m):
    return ((x + m - 1) // m) * m


def _ls_ce_kernel(pred_ref, tgt_ref, out_ref, *, smoothing, num_classes,
                  num_rows, tm):
    """One row tile: fused log-softmax + label-smoothing CE -> partial sum."""
    i = pl.program_id(0)

    x = pred_ref[...].astype(jnp.float32)                        # (tm, C)
    tgt = tgt_ref[...]                                           # (tm, 1) int32
    # (1, C) lane iota; the == broadcast against (tm, 1) builds the one-hot
    # selector without materializing a (tm, C) int tensor.
    cls = jax.lax.broadcasted_iota(jnp.int32, (1, num_classes), 1)
    onehot = cls == tgt                                          # (tm, C) bool

    # loss = (1-s)*nll + s*smooth = lse - (1-s)*shifted[tgt] - (s/C)*sum(shifted)
    m = jnp.max(x, axis=-1, keepdims=True)                       # (tm, 1)
    shifted = x - m
    lse = jnp.log(jnp.sum(jnp.exp(shifted), axis=-1, keepdims=True))
    tgt_shift = jnp.sum(jnp.where(onehot, shifted, 0.0), axis=-1, keepdims=True)
    sum_shift = jnp.sum(shifted, axis=-1, keepdims=True)
    loss = (lse
            - (1.0 - smoothing) * tgt_shift
            - (smoothing / num_classes) * sum_shift)             # (tm, 1)

    if num_rows % tm != 0:
        # Ragged trailing block: out-of-bounds rows contain garbage (possibly
        # Inf/NaN), so neutralize them with a select (NOT a multiply-by-mask).
        row = i * tm + jax.lax.broadcasted_iota(jnp.int32, loss.shape, 0)
        loss = jnp.where(row < num_rows, loss, 0.0)

    out_ref[...] = jnp.sum(loss, axis=0, keepdims=True).reshape(1, 1, 1)


def _vmem_budgets():
    """Per-generation (vmem_limit_bytes, block_budget_bytes)."""
    try:
        vmem_cap = int(pltpu.get_tpu_info().vmem_capacity_bytes)
    except Exception:
        vmem_cap = 64 * 1024 * 1024                  # safe floor (v7x per-TC)
    vmem_limit = min((vmem_cap * 3) // 4, 96 * 1024 * 1024)   # 96 MiB v5e/v6e, 48 MiB v7x
    block_budget = min(24 * 1024 * 1024, vmem_limit // 3)     # 24 MiB / 16 MiB
    return vmem_limit, block_budget


def _dimension_semantics(num_tiles):
    # v7x has 2 TensorCores per chip: shard the row-tile loop across them.
    try:
        if num_tiles >= 2 and "v7" in jax.devices()[0].device_kind.lower():
            return (pltpu.CORE_PARALLEL,)
    except Exception:
        pass
    return ("parallel",)


def label_smoothing_cross_entropy(pred, target, smoothing=0.1, *, tm=None):
    """pred: (N, C) float logits (f32 or bf16); target: (N,) int labels.

    Returns the scalar mean label-smoothed cross-entropy (f32).
    """
    N, C = pred.shape
    in_bytes = jnp.dtype(pred.dtype).itemsize
    c_phys = _round_up(C, 128)                       # physical lane footprint

    vmem_limit, block_budget = _vmem_budgets()
    if tm is None:
        # Per row: double-buffered pred block + ~4 live f32 (tm, C) temps
        # + the (tm, 1) int32 target block (lane-padded to 128 lanes, double-
        # buffered -> ~1 KiB/row) which the old heuristic ignored.
        per_row_bytes = c_phys * (2 * in_bytes + 4 * 4) + 2 * 128 * 4
        tm = block_budget // per_row_bytes
    tm = max(8, (min(tm, _round_up(N, 8)) // 8) * 8)
    # TODO(synk): for very large class counts (LM vocab >> VMEM) add a class-
    # axis grid dimension with online-LSE accumulation instead of one (tm, C)
    # block per step (mandatory much earlier on v7x's 64 MiB VMEM).

    num_tiles = pl.cdiv(N, tm)
    tgt2d = target.astype(jnp.int32).reshape(N, 1)

    kernel = functools.partial(
        _ls_ce_kernel, smoothing=float(smoothing), num_classes=C,
        num_rows=N, tm=tm)

    cost = pl.CostEstimate(
        flops=6 * N * C,
        transcendentals=N * C,
        bytes_accessed=N * C * in_bytes + N * 4 + num_tiles * 4)

    partial_sums = pl.pallas_call(
        kernel,
        out_shape=jax.ShapeDtypeStruct((num_tiles, 1, 1), jnp.float32),
        grid_spec=pltpu.PrefetchScalarGridSpec(
            num_scalar_prefetch=0,
            grid=(num_tiles,),
            in_specs=[
                # Full-extent class axis (block last dim == C, legal even when
                # C % 128 != 0) -> no HBM padding copy; ragged trailing row
                # block is masked inside the kernel.
                pl.BlockSpec((tm, C), lambda i: (i, 0)),
                pl.BlockSpec((tm, 1), lambda i: (i, 0)),
            ],
            out_specs=pl.BlockSpec((1, 1, 1), lambda i: (i, 0, 0)),
        ),
        compiler_params=pltpu.CompilerParams(
            dimension_semantics=_dimension_semantics(num_tiles),
            vmem_limit_bytes=int(vmem_limit),
        ),
        cost_estimate=cost,
    )(pred, tgt2d)

    return (jnp.sum(partial_sums) / N).astype(jnp.float32)


def _reference(pred, target, smoothing=0.1):
    log_probs = jax.nn.log_softmax(pred.astype(jnp.float32), axis=-1)
    nll = -jnp.take_along_axis(log_probs, target[:, None], axis=-1)[:, 0]
    smooth = -jnp.mean(log_probs, axis=-1)
    return jnp.mean((1.0 - smoothing) * nll + smoothing * smooth)


if __name__ == "__main__":
    key = jax.random.PRNGKey(0)
    k1, k2, k3, k4 = jax.random.split(key, 4)

    # Main check: small shapes consistent with the module (batch of logits).
    N, C = 16, 32
    pred = jax.random.normal(k1, (N, C), dtype=jnp.float32)
    target = jax.random.randint(k2, (N,), 0, C, dtype=jnp.int32)

    out = label_smoothing_cross_entropy(pred, target, smoothing=0.1)
    out = jax.block_until_ready(out)
    ref = _reference(pred, target, smoothing=0.1)
    assert jnp.allclose(out, ref, atol=1e-5, rtol=1e-5), (out, ref)

    # Secondary check: ragged batch (multi-tile grid + trailing-block masking,
    # with no wrapper-side padding of pred or target).
    N2, C2 = 13, 32
    pred2 = jax.random.normal(k3, (N2, C2), dtype=jnp.float32)
    target2 = jax.random.randint(k4, (N2,), 0, C2, dtype=jnp.int32)
    out2 = jax.block_until_ready(
        label_smoothing_cross_entropy(pred2, target2, smoothing=0.1, tm=8))
    ref2 = _reference(pred2, target2, smoothing=0.1)
    assert jnp.allclose(out2, ref2, atol=1e-5, rtol=1e-5), (out2, ref2)

    print("KERNEL_OK")
</pallas_src>

<mosaic_0001>
module attributes {stable_mosaic.version = 11 : i64} {
  func.func @_ls_ce_kernel(%arg0: i32, %arg1: memref<16x32xf32, #tpu.memory_space<vmem>>, %arg2: memref<16x1xi32, #tpu.memory_space<vmem>>, %arg3: memref<1x1x1xf32, #tpu.memory_space<vmem>>) attributes {dimension_semantics = [#tpu.dimension_semantics<parallel>], iteration_bounds = array<i64: 1>, scalar_prefetch = 0 : i64, scratch_operands = 0 : i64, tpu.core_type = #tpu.core_type<tc>, window_params = [{transform_indices = @transform_0, window_bounds = array<i64: 16, 32>}, {transform_indices = @transform_1, window_bounds = array<i64: 16, 1>}, {transform_indices = @transform_2, window_bounds = array<i64: 1, 1, 1>}]} {
    %c0 = arith.constant 0 : index
    %c0_0 = arith.constant 0 : index
    %0 = vector.load %arg1[%c0, %c0_0] : memref<16x32xf32, #tpu.memory_space<vmem>>, vector<16x32xf32>
    %c0_1 = arith.constant 0 : index
    %c0_2 = arith.constant 0 : index
    %1 = vector.load %arg2[%c0_1, %c0_2] : memref<16x1xi32, #tpu.memory_space<vmem>>, vector<16x1xi32>
    %2 = tpu.iota {dimensions = array<i32: 1>} : vector<1x32xi32>
    %3 = vector.broadcast %2 : vector<1x32xi32> to vector<16x32xi32>
    %4 = vector.broadcast %1 : vector<16x1xi32> to vector<16x32xi32>
    %5 = arith.cmpi eq, %3, %4 : vector<16x32xi32>
    %cst = arith.constant dense<0xFF800000> : vector<16xf32>
    %6 = vector.multi_reduction <maximumf>, %0, %cst [1] : vector<16x32xf32> to vector<16xf32>
    %7 = vector.shape_cast %6 : vector<16xf32> to vector<16x1xf32>
    %8 = vector.broadcast %7 : vector<16x1xf32> to vector<16x32xf32>
    %9 = arith.subf %0, %8 : vector<16x32xf32>
    %10 = math.exp %9 : vector<16x32xf32>
    %cst_3 = arith.constant dense<0.000000e+00> : vector<16xf32>
    %11 = vector.multi_reduction <add>, %10, %cst_3 [1] : vector<16x32xf32> to vector<16xf32>
    %12 = vector.shape_cast %11 : vector<16xf32> to vector<16x1xf32>
    %13 = math.log %12 : vector<16x1xf32>
    %cst_4 = arith.constant 0.000000e+00 : f32
    %14 = vector.broadcast %cst_4 : f32 to vector<16x32xf32>
    %15 = arith.select %5, %9, %14 : vector<16x32xi1>, vector<16x32xf32>
    %cst_5 = arith.constant dense<0.000000e+00> : vector<16xf32>
    %16 = vector.multi_reduction <add>, %15, %cst_5 [1] : vector<16x32xf32> to vector<16xf32>
    %17 = vector.shape_cast %16 : vector<16xf32> to vector<16x1xf32>
    %cst_6 = arith.constant dense<0.000000e+00> : vector<16xf32>
    %18 = vector.multi_reduction <add>, %9, %cst_6 [1] : vector<16x32xf32> to vector<16xf32>
    %19 = vector.shape_cast %18 : vector<16xf32> to vector<16x1xf32>
    %cst_7 = arith.constant 0.899999976 : f32
    %20 = vector.broadcast %cst_7 : f32 to vector<16x1xf32>
    %21 = arith.mulf %20, %17 : vector<16x1xf32>
    %22 = arith.subf %13, %21 : vector<16x1xf32>
    %cst_8 = arith.constant 3.125000e-03 : f32
    %23 = vector.broadcast %cst_8 : f32 to vector<16x1xf32>
    %24 = arith.mulf %23, %19 : vector<16x1xf32>
    %25 = arith.subf %22, %24 : vector<16x1xf32>
    %cst_9 = arith.constant dense<0.000000e+00> : vector<1xf32>
    %26 = vector.multi_reduction <add>, %25, %cst_9 [0] : vector<16x1xf32> to vector<1xf32>
    %27 = vector.shape_cast %26 : vector<1xf32> to vector<1x1xf32>
    %28 = vector.shape_cast %27 : vector<1x1xf32> to vector<1x1x1xf32>
    %c0_10 = arith.constant 0 : index
    %c0_11 = arith.constant 0 : index
    %c0_12 = arith.constant 0 : index
    %29 = vector.load %arg3[%c0_10, %c0_11, %c0_12] : memref<1x1x1xf32, #tpu.memory_space<vmem>>, vector<1x1x1xf32>
    tpu.vector_store %arg3[%c0_10, %c0_11, %c0_12], %28 {strides = array<i32>} : memref<1x1x1xf32, #tpu.memory_space<vmem>>, vector<1x1x1xf32>,
    return
  }
  func.func @transform_0(%arg0: i32) -> (i32, i32) {
    %c0_i32 = arith.constant 0 : i32
    %c0_i32_0 = arith.constant 0 : i32
    return %arg0, %c0_i32 : i32, i32
  }
  func.func @transform_1(%arg0: i32) -> (i32, i32) {
    %c0_i32 = arith.constant 0 : i32
    %c0_i32_0 = arith.constant 0 : i32
    return %arg0, %c0_i32 : i32, i32
  }
  func.func @transform_2(%arg0: i32) -> (i32, i32, i32) {
    %c0_i32 = arith.constant 0 : i32
    %c0_i32_0 = arith.constant 0 : i32
    %c0_i32_1 = arith.constant 0 : i32
    return %arg0, %c0_i32, %c0_i32_0 : i32, i32, i32
  }
}

</mosaic_0001>

<llo_original>
// kernel: tpu_custom_call.1
$region0: #{tpu_custom_call.1}
  #allocation0 [shape = 'u32[]', space=smem, size = 0x4, offset = 0x4, fixed_abs, tag = 'smem constant byte address 0x4 - core index']
  #allocation1 [shape = 'u32[144,128]{1,0:T(1,128)}', space=vmem, size = 0x12000, scoped, tag = 'internal scratch']
  %s0 = inlined_call_operand.vmem [shape: f32[16,32], index: 0, kind: input, shape index: {}]
  %s1 = inlined_call_operand.vmem [shape: s32[16,1], index: 1, kind: input, shape index: {}]
  %s2 = inlined_call_operand.hbm [shape: f32[1,1,1], index: 2, kind: output, shape index: {}]
  %s3 = sld [smem:[#allocation0]]
  $region18: #{tpu_custom_call.1} parent=0
    _
  %s5 = ssub.s32 1, %s3
  %s6 = scalar_select 0, %s5, %s3
  $region1: #{tpu_custom_call.1} parent=0
    #allocation2 [shape = 'u8[512]{0}', space=vmem, size = 0x400, scoped, tag = 'output window, operand 0, single buffered']
    #allocation3 [shape = 's32[1]{0}', space=sflag, size = 0x4, scoped, tag = 'scoped memory for tpu_custom_call.1']
    %7 = vsyncpa [#allocation3], 0
    // Predicated region
    $region2: #{tpu_custom_call.1} parent=1 // pred_check
      _
    $region3: #{tpu_custom_call.1} parent=1 // pred_check_branch
      %9 = sbr.rel (0) target = $region5
    $region4: #{tpu_custom_call.1} parent=1 // pred_region
      _
    $region5: #{tpu_custom_call.1} parent=1 // pred_fallthru
      _
    // Predicated region
    $region6: #{tpu_custom_call.1} parent=1 // pred_check
      _
    $region7: #{tpu_custom_call.1} parent=1 // pred_check_branch
      %11 = sbr.rel (0) target = $region9
    $region8: #{tpu_custom_call.1} parent=1 // pred_region
      _
    $region9: #{tpu_custom_call.1} parent=1 // pred_fallthru
      _
    %v12 = vld [vmem:[%s0] sm:$0xff]
    %v13 = vld [vmem:[%s0 + $0x8] sm:$0xff]
    %v14 = vld [vmem:[%s1] sm:$0xff]
    %v15 = vld [vmem:[%s1 + $0x8] sm:$0xff]
    %v16 = vlaneseq
    %v17 = vand.u32 %v16, 127
    %18 = vset.pattern.permute.xlu0 0
    %19 = vperm.xlu0 %18, %v14
    %v20 = vpop.permute.xlu0 %19
    %21 = vset.pattern.permute.xlu0 0
    %22 = vperm.xlu0 %21, %v15
    %v23 = vpop.permute.xlu0 %22
    %vm24 = vcmp.eq.s32.totalorder %v17, %v20
    %vm25 = vcmp.eq.s32.totalorder %v17, %v23
    %vm26 = vcmask 261120
    %v27 = vsel %vm26, %v12, -inf
    %28 = vmax.xlane.f32.xlu0 %v27
    %v29 = vpop.xlane.xlu0 %28
    %v30 = vsel %vm26, %v13, -inf
    %31 = vmax.xlane.f32.xlu0 %v30
    %v32 = vpop.xlane.xlu0 %31
    %v33 = vsub.f32 %v12, %v29
    %v34 = vsub.f32 %v13, %v32
    %v35 = vmul.f32 %v33, 1.442695
    %v36 = vpow.pop %v35
    %v37 = vmul.f32 %v34, 1.442695
    %v38 = vpow.pop %v37
    %v39 = vsel %vm26, %v36, 0.0
    %40 = vadd.xlane.f32.xlu0 %v39
    %v41 = vpop.xlane.xlu0 %40
    %v42 = vsel %vm26, %v38, 0.0
    %43 = vadd.xlane.f32.xlu0 %v42
    %v44 = vpop.xlane.xlu0 %43
    %v45 = vlog2.pop %v41
    %v46 = vmul.f32 %v45, 0.6931472
    %v47 = vlog2.pop %v44
    %v48 = vmul.f32 %v47, 0.6931472
    %v49 = vsel %vm24, %v33, 0.0
    %v50 = vsel %vm25, %v34, 0.0
    %v51 = vsel %vm26, %v49, 0.0
    %52 = vadd.xlane.f32.xlu0 %v51
    %v53 = vpop.xlane.xlu0 %52
    %v54 = vsel %vm26, %v50, 0.0
    %55 = vadd.xlane.f32.xlu0 %v54
    %v56 = vpop.xlane.xlu0 %55
    %v57 = vsel %vm26, %v33, 0.0
    %58 = vadd.xlane.f32.xlu0 %v57
    %v59 = vpop.xlane.xlu0 %58
    %v60 = vsel %vm26, %v34, 0.0
    %61 = vadd.xlane.f32.xlu0 %v60
    %v62 = vpop.xlane.xlu0 %61
    %v63 = vmul.f32 %v53, 0.9
    %v64 = vmul.f32 %v56, 0.9
    %v65 = vsub.f32 %v46, %v63
    %v66 = vsub.f32 %v48, %v64
    %v67 = vmul.f32 %v59, 0.003125
    %v68 = vmul.f32 %v62, 0.003125
    %v69 = vsub.f32 %v65, %v67
    %v70 = vsub.f32 %v66, %v68
    %v71 = vadd.f32 %v69, %v70
    %v72 = vrot.slane %v71, 4
    %v73 = vadd.f32 %v71, %v72
    %v74 = vrot.slane %v73, 2
    %v75 = vadd.f32 %v73, %v74
    %v76 = vrot.slane %v75, 1
    %v77 = vadd.f32 %v75, %v76
    %vm78 = vcmask 0
    %79 = vst.msk [vmem:[#allocation2] sm:$0x1] %vm78, %v77
    // Predicated region
    $region10: #{tpu_custom_call.1} parent=1 // pred_check
      _
    $region11: #{tpu_custom_call.1} parent=1 // pred_check_branch
      %81 = sbr.rel (0) target = $region13
    $region12: #{tpu_custom_call.1} parent=1 // pred_region
      %s83 = ssub.s32 16, 16
      %84 = vsyncadd [#allocation3], %s83
      %s86 = sshll.u32 [#allocation2], 4
      %s87 = int_to_ptr.vmem [resolvable:$true] %s86
      %89 = dma.vmem_to_hbm [thread:$0]  %s87, 16, %s2, [#allocation3]
    $region13: #{tpu_custom_call.1} parent=1 // pred_fallthru
      _
    // Predicated region
    $region14: #{tpu_custom_call.1} parent=1 // pred_check
      _
    $region15: #{tpu_custom_call.1} parent=1 // pred_check_branch
      %91 = sbr.rel (0) target = $region17
    $region16: #{tpu_custom_call.1} parent=1 // pred_region
      %92 = dma.done [#allocation3], 16
    $region17: #{tpu_custom_call.1} parent=1 // pred_fallthru
      _
    %93 = vsyncpa [#allocation3], 1

</llo_original>
